<compile_context>
chip_gen: v7x
topology: tpu7x:2x2x1
jax: 0.10.0
libtpu: 0.0.40
codegen_flags: <defaults>
</compile_context>

<pallas_src>
import jax
import jax.numpy as jnp
from jax import lax
from jax.experimental import pallas as pl
from jax.experimental.pallas import tpu as pltpu


def basic_block_kernel(x_ref, wb1_ref, b1_ref, wb2_ref, b2_ref, o_ref, mid_ref):
    # x_ref:   (bt, H+2, W*Cin)  bf16  lane-dense, row-padded (pad rows are zero)
    # wb*_ref: (3, W*Cin, W*Cout) bf16 banded conv weights (BN scale folded in)
    # b*_ref:  (1, W*Cout)        f32  fused BN bias, tiled across W
    # o_ref:   (bt, H, W*Cout)         lane-dense output slab
    # mid_ref: (H+2, W*Cout)      bf16 VMEM scratch: row-padded conv1 output
    bt, Hp, _ = x_ref.shape
    H = Hp - 2
    WCo = o_ref.shape[-1]

    # Zero only the two 1-row halos, once per grid step (interior is fully
    # overwritten for every image; per-step zeroing is megacore-safe).
    zrow = jnp.zeros((1, WCo), mid_ref.dtype)
    mid_ref[0:1, :] = zrow
    mid_ref[H + 1:H + 2, :] = zrow

    for t in range(bt):  # static unroll over the images of this grid step
        # --- conv1 + bn1 scale (folded into wb1): 3 banded MXU matmuls, K=W*Cin ---
        acc1 = jnp.dot(x_ref[t, 0:H, :], wb1_ref[0],
                       preferred_element_type=jnp.float32)
        acc1 = acc1 + jnp.dot(x_ref[t, 1:H + 1, :], wb1_ref[1],
                              preferred_element_type=jnp.float32)
        acc1 = acc1 + jnp.dot(x_ref[t, 2:H + 2, :], wb1_ref[2],
                              preferred_element_type=jnp.float32)
        # bn1 bias + relu on the dense (H, W*Cout) slab
        out1 = jnp.maximum(acc1 + b1_ref[...], 0.0)

        # Stage lane-dense, row-padded conv1 output (dense unmasked 128-lane store).
        mid_ref[1:H + 1, :] = out1.astype(mid_ref.dtype)

        # --- conv2 + bn2 scale (folded into wb2): 3 banded MXU matmuls ---
        acc2 = jnp.dot(mid_ref[0:H, :], wb2_ref[0],
                       preferred_element_type=jnp.float32)
        acc2 = acc2 + jnp.dot(mid_ref[1:H + 1, :], wb2_ref[1],
                              preferred_element_type=jnp.float32)
        acc2 = acc2 + jnp.dot(mid_ref[2:H + 2, :], wb2_ref[2],
                              preferred_element_type=jnp.float32)

        # Residual identity sliced straight from the bf16 input slab
        # (Cin == Cout, so the lane layout matches W*Cout).
        identity = x_ref[t, 1:H + 1, :].astype(jnp.float32)

        # bn2 bias + residual + relu on the dense slab, lane-dense store.
        o_ref[t, :, :] = jnp.maximum(acc2 + b2_ref[...] + identity,
                                     0.0).astype(o_ref.dtype)


def _fuse_bn(gamma, beta, mean, var, eps=1e-5):
    scale = gamma / jnp.sqrt(var + eps)
    bias = beta - mean * scale
    return scale.astype(jnp.float32), bias.astype(jnp.float32)


def _build_banded_weight(w_oihw, scale, W):
    """torch (Cout, Cin, 3, 3) conv weight + fused BN scale -> (3, W*Cin, W*Cout)
    block-tridiagonal band matrices, one per kernel row ky, bf16 MXU operands.

    band[ky, w_in*Cin + ci, w_out*Cout + co] = w[ky, kx, ci, co] * scale[co]
    with kx = w_in - w_out + 1 when 0 <= kx <= 2 (i.e. |w_in - w_out| <= 1),
    which implements the horizontal 3-tap + width padding implicitly.
    """
    Cout, Cin = w_oihw.shape[0], w_oihw.shape[1]
    # (ky, kx, Cin, Cout) with the BN scale folded into the output channels (f32).
    w = jnp.transpose(w_oihw, (2, 3, 1, 0)).astype(jnp.float32)
    w = w * scale.reshape(1, 1, 1, Cout)

    w_in = jnp.arange(W * Cin) // Cin
    ci = jnp.arange(W * Cin) % Cin
    w_out = jnp.arange(W * Cout) // Cout
    co = jnp.arange(W * Cout) % Cout
    kx = w_in[:, None] - w_out[None, :] + 1          # (W*Cin, W*Cout)
    valid = (kx >= 0) & (kx <= 2)
    kx_c = jnp.clip(kx, 0, 2)
    gathered = w[:, kx_c, ci[:, None], co[None, :]]  # (3, W*Cin, W*Cout)
    band = jnp.where(valid[None], gathered, 0.0)
    return band.astype(jnp.bfloat16)


def _pick_bt(B, max_bt=8):
    """Images per grid step: amortize per-step overhead but keep >= 2 grid steps
    so both v7x TensorCores get work."""
    bt = 1
    for cand in range(1, max_bt + 1):
        if B % cand == 0 and B // cand >= 2:
            bt = cand
    return bt


def basic_block_forward(x_nchw, params, *, bt=None):
    """x_nchw: (B, C, H, W) float32. params: dict of conv/bn parameters."""
    B, C, H, W = x_nchw.shape
    Cout = params["w1"].shape[0]
    assert C == Cout, "BasicBlock with downsample=None requires inplanes == planes"
    # TODO(synk): stride>1 / downsample path of BasicBlock is not implemented
    # (the reference module is instantiated with stride=1, downsample=None).

    if bt is None:
        bt = _pick_bt(B)
    assert B % bt == 0
    WC, WCo = W * C, W * Cout

    # NCHW -> channel-minor lane-dense rows (B, H, W*C), row-padded by 1, bf16.
    # Width padding is handled by the band structure, so no lane padding needed.
    x_rows = jnp.transpose(x_nchw, (0, 2, 3, 1)).reshape(B, H, WC)
    x_pad = jnp.pad(x_rows, ((0, 0), (1, 1), (0, 0))).astype(jnp.bfloat16)

    s1, b1 = _fuse_bn(params["g1"], params["be1"], params["m1"], params["v1"])
    s2, b2 = _fuse_bn(params["g2"], params["be2"], params["m2"], params["v2"])
    wb1 = _build_banded_weight(params["w1"], s1, W)     # (3, WC, WCo) bf16
    wb2 = _build_banded_weight(params["w2"], s2, W)     # (3, WCo, WCo) bf16
    b1t = jnp.tile(b1, W).reshape(1, WCo).astype(jnp.float32)
    b2t = jnp.tile(b2, W).reshape(1, WCo).astype(jnp.float32)

    flops = int(2 * 2 * 3 * B * H * WC * WCo)           # 2 convs, 3 ky matmuls each
    bytes_accessed = int(x_pad.size * 2 + B * H * WCo * 4 +
                         (wb1.size + wb2.size) * 2 + (b1t.size + b2t.size) * 4)

    grid_spec = pltpu.PrefetchScalarGridSpec(
        num_scalar_prefetch=0,
        grid=(B // bt,),
        in_specs=[
            pl.BlockSpec((bt, H + 2, WC), lambda g: (g, 0, 0)),   # x (lane-dense)
            pl.BlockSpec((3, WC, WCo), lambda g: (0, 0, 0)),      # banded w1*s1
            pl.BlockSpec((1, WCo), lambda g: (0, 0)),             # tiled bn1 bias
            pl.BlockSpec((3, WCo, WCo), lambda g: (0, 0, 0)),     # banded w2*s2
            pl.BlockSpec((1, WCo), lambda g: (0, 0)),             # tiled bn2 bias
        ],
        out_specs=pl.BlockSpec((bt, H, WCo), lambda g: (g, 0, 0)),
        scratch_shapes=[pltpu.VMEM((H + 2, WCo), jnp.bfloat16)],
    )

    out_folded = pl.pallas_call(
        basic_block_kernel,
        out_shape=jax.ShapeDtypeStruct((B, H, WCo), x_nchw.dtype),
        grid_spec=grid_spec,
        compiler_params=pltpu.CompilerParams(
            dimension_semantics=("parallel",),
            vmem_limit_bytes=32 * 1024 * 1024),
        cost_estimate=pl.CostEstimate(flops=flops, transcendentals=0,
                                      bytes_accessed=bytes_accessed),
    )(x_pad, wb1, b1t, wb2, b2t)

    out_nhwc = out_folded.reshape(B, H, W, Cout)
    return jnp.transpose(out_nhwc, (0, 3, 1, 2))   # back to NCHW


def basic_block_reference(x_nchw, params):
    """Pure-JAX reference (lax.conv, f32) for validation."""
    def conv3x3(x, w_oihw):
        w_hwio = jnp.transpose(w_oihw, (2, 3, 1, 0))
        return lax.conv_general_dilated(
            x, w_hwio, window_strides=(1, 1), padding=((1, 1), (1, 1)),
            dimension_numbers=("NHWC", "HWIO", "NHWC"))

    def bn(x, g, b, m, v, eps=1e-5):
        return (x - m) / jnp.sqrt(v + eps) * g + b

    x = jnp.transpose(x_nchw, (0, 2, 3, 1))
    out = conv3x3(x, params["w1"])
    out = jnp.maximum(bn(out, params["g1"], params["be1"], params["m1"], params["v1"]), 0.0)
    out = conv3x3(out, params["w2"])
    out = bn(out, params["g2"], params["be2"], params["m2"], params["v2"])
    out = jnp.maximum(out + x, 0.0)
    return jnp.transpose(out, (0, 3, 1, 2))


if __name__ == "__main__":
    B, C, H, W = 2, 8, 16, 16   # inplanes == planes == 8, stride=1, downsample=None
    key = jax.random.PRNGKey(0)
    ks = jax.random.split(key, 11)

    x = jax.random.normal(ks[0], (B, C, H, W), jnp.float32)

    params = {
        "w1": 0.1 * jax.random.normal(ks[1], (C, C, 3, 3), jnp.float32),   # conv1 weight
        "w2": 0.1 * jax.random.normal(ks[2], (C, C, 3, 3), jnp.float32),   # conv2 weight
        "g1": 1.0 + 0.1 * jax.random.normal(ks[3], (C,), jnp.float32),     # bn1 gamma
        "be1": 0.1 * jax.random.normal(ks[4], (C,), jnp.float32),          # bn1 beta
        "m1": 0.1 * jax.random.normal(ks[5], (C,), jnp.float32),           # bn1 running_mean
        "v1": 1.0 + 0.1 * jax.random.uniform(ks[6], (C,), jnp.float32),    # bn1 running_var
        "g2": 1.0 + 0.1 * jax.random.normal(ks[7], (C,), jnp.float32),     # bn2 gamma
        "be2": 0.1 * jax.random.normal(ks[8], (C,), jnp.float32),          # bn2 beta
        "m2": 0.1 * jax.random.normal(ks[9], (C,), jnp.float32),           # bn2 running_mean
        "v2": 1.0 + 0.1 * jax.random.uniform(ks[10], (C,), jnp.float32),   # bn2 running_var
    }

    fwd = jax.jit(basic_block_forward)   # lets XLA fuse the layout/pad/cast prologue
    out = jax.block_until_ready(fwd(x, params))
    ref = jax.block_until_ready(basic_block_reference(x, params))

    assert out.shape == (B, C, H, W)
    # bf16 MXU operands + bf16 identity (f32 accumulation) -> loose-ish tolerance.
    max_err = float(jnp.max(jnp.abs(out - ref)))
    assert jnp.allclose(out, ref, atol=5e-2, rtol=5e-2), f"max abs err {max_err}"

    print("KERNEL_OK")
</pallas_src>

<mosaic_0001>
module attributes {stable_mosaic.version = 11 : i64} {
  func.func @basic_block_kernel(%arg0: i32, %arg1: memref<1x18x128xbf16, #tpu.memory_space<vmem>>, %arg2: memref<3x128x128xbf16, #tpu.memory_space<vmem>>, %arg3: memref<1x128xf32, #tpu.memory_space<vmem>>, %arg4: memref<3x128x128xbf16, #tpu.memory_space<vmem>>, %arg5: memref<1x128xf32, #tpu.memory_space<vmem>>, %arg6: memref<1x16x128xf32, #tpu.memory_space<vmem>>, %arg7: memref<18x128xbf16, #tpu.memory_space<vmem>>) attributes {dimension_semantics = [#tpu.dimension_semantics<parallel>], iteration_bounds = array<i64: 2>, scalar_prefetch = 0 : i64, scratch_operands = 1 : i64, tpu.core_type = #tpu.core_type<tc>, window_params = [{transform_indices = @transform_0, window_bounds = array<i64: 1, 18, 128>}, {pipeline_mode = #tpu.pipeline_mode<synchronous>, transform_indices = @transform_1, window_bounds = array<i64: 3, 128, 128>}, {pipeline_mode = #tpu.pipeline_mode<synchronous>, transform_indices = @transform_2, window_bounds = array<i64: 1, 128>}, {pipeline_mode = #tpu.pipeline_mode<synchronous>, transform_indices = @transform_3, window_bounds = array<i64: 3, 128, 128>}, {pipeline_mode = #tpu.pipeline_mode<synchronous>, transform_indices = @transform_4, window_bounds = array<i64: 1, 128>}, {transform_indices = @transform_5, window_bounds = array<i64: 1, 16, 128>}]} {
    %cst = arith.constant 0.000000e+00 : bf16
    %0 = vector.broadcast %cst : bf16 to vector<1x128xbf16>
    %c0 = arith.constant 0 : index
    %c0_0 = arith.constant 0 : index
    %1 = vector.load %arg7[%c0, %c0_0] : memref<18x128xbf16, #tpu.memory_space<vmem>>, vector<1x128xbf16>
    tpu.vector_store %arg7[%c0, %c0_0], %0 {strides = array<i32>} : memref<18x128xbf16, #tpu.memory_space<vmem>>, vector<1x128xbf16>,
    %c17 = arith.constant 17 : index
    %c0_1 = arith.constant 0 : index
    %2 = vector.load %arg7[%c17, %c0_1] : memref<18x128xbf16, #tpu.memory_space<vmem>>, vector<1x128xbf16>
    tpu.vector_store %arg7[%c17, %c0_1], %0 {strides = array<i32>} : memref<18x128xbf16, #tpu.memory_space<vmem>>, vector<1x128xbf16>,
    %c0_2 = arith.constant 0 : index
    %c0_3 = arith.constant 0 : index
    %c0_4 = arith.constant 0 : index
    %3 = vector.load %arg1[%c0_2, %c0_3, %c0_4] : memref<1x18x128xbf16, #tpu.memory_space<vmem>>, vector<1x16x128xbf16>
    %4 = vector.shape_cast %3 : vector<1x16x128xbf16> to vector<16x128xbf16>
    %c0_5 = arith.constant 0 : index
    %c0_6 = arith.constant 0 : index
    %c0_7 = arith.constant 0 : index
    %5 = vector.load %arg2[%c0_5, %c0_6, %c0_7] : memref<3x128x128xbf16, #tpu.memory_space<vmem>>, vector<1x128x128xbf16>
    %6 = vector.shape_cast %5 : vector<1x128x128xbf16> to vector<128x128xbf16>
    %cst_8 = arith.constant dense<0.000000e+00> : vector<16x128xf32>
    %7 = tpu.matmul %4, %6, %cst_8 {dimension_numbers = #tpu.dot_dimension_numbers<[1], [0], [0], [1], [0, 0, 1, 1], [], []>} : vector<16x128xbf16>, vector<128x128xbf16>, vector<16x128xf32> -> vector<16x128xf32>
    %c0_9 = arith.constant 0 : index
    %c1 = arith.constant 1 : index
    %c0_10 = arith.constant 0 : index
    %8 = vector.load %arg1[%c0_9, %c1, %c0_10] : memref<1x18x128xbf16, #tpu.memory_space<vmem>>, vector<1x16x128xbf16>
    %9 = vector.shape_cast %8 : vector<1x16x128xbf16> to vector<16x128xbf16>
    %c1_11 = arith.constant 1 : index
    %c0_12 = arith.constant 0 : index
    %c0_13 = arith.constant 0 : index
    %10 = vector.load %arg2[%c1_11, %c0_12, %c0_13] : memref<3x128x128xbf16, #tpu.memory_space<vmem>>, vector<1x128x128xbf16>
    %11 = vector.shape_cast %10 : vector<1x128x128xbf16> to vector<128x128xbf16>
    %cst_14 = arith.constant dense<0.000000e+00> : vector<16x128xf32>
    %12 = tpu.matmul %9, %11, %cst_14 {dimension_numbers = #tpu.dot_dimension_numbers<[1], [0], [0], [1], [0, 0, 1, 1], [], []>} : vector<16x128xbf16>, vector<128x128xbf16>, vector<16x128xf32> -> vector<16x128xf32>
    %13 = arith.addf %7, %12 : vector<16x128xf32>
    %c0_15 = arith.constant 0 : index
    %c2 = arith.constant 2 : index
    %c0_16 = arith.constant 0 : index
    %14 = vector.load %arg1[%c0_15, %c2, %c0_16] : memref<1x18x128xbf16, #tpu.memory_space<vmem>>, vector<1x16x128xbf16>
    %15 = vector.shape_cast %14 : vector<1x16x128xbf16> to vector<16x128xbf16>
    %c2_17 = arith.constant 2 : index
    %c0_18 = arith.constant 0 : index
    %c0_19 = arith.constant 0 : index
    %16 = vector.load %arg2[%c2_17, %c0_18, %c0_19] : memref<3x128x128xbf16, #tpu.memory_space<vmem>>, vector<1x128x128xbf16>
    %17 = vector.shape_cast %16 : vector<1x128x128xbf16> to vector<128x128xbf16>
    %cst_20 = arith.constant dense<0.000000e+00> : vector<16x128xf32>
    %18 = tpu.matmul %15, %17, %cst_20 {dimension_numbers = #tpu.dot_dimension_numbers<[1], [0], [0], [1], [0, 0, 1, 1], [], []>} : vector<16x128xbf16>, vector<128x128xbf16>, vector<16x128xf32> -> vector<16x128xf32>
    %19 = arith.addf %13, %18 : vector<16x128xf32>
    %c0_21 = arith.constant 0 : index
    %c0_22 = arith.constant 0 : index
    %20 = vector.load %arg3[%c0_21, %c0_22] : memref<1x128xf32, #tpu.memory_space<vmem>>, vector<1x128xf32>
    %21 = vector.broadcast %20 : vector<1x128xf32> to vector<16x128xf32>
    %22 = arith.addf %19, %21 : vector<16x128xf32>
    %cst_23 = arith.constant 0.000000e+00 : f32
    %23 = vector.broadcast %cst_23 : f32 to vector<16x128xf32>
    %24 = arith.maximumf %22, %23 : vector<16x128xf32>
    %25 = arith.truncf %24 : vector<16x128xf32> to vector<16x128xbf16>
    %c1_24 = arith.constant 1 : index
    %c0_25 = arith.constant 0 : index
    %26 = vector.load %arg7[%c1_24, %c0_25] : memref<18x128xbf16, #tpu.memory_space<vmem>>, vector<16x128xbf16>
    tpu.vector_store %arg7[%c1_24, %c0_25], %25 {strides = array<i32>} : memref<18x128xbf16, #tpu.memory_space<vmem>>, vector<16x128xbf16>,
    %c0_26 = arith.constant 0 : index
    %c0_27 = arith.constant 0 : index
    %27 = vector.load %arg7[%c0_26, %c0_27] : memref<18x128xbf16, #tpu.memory_space<vmem>>, vector<16x128xbf16>
    %c0_28 = arith.constant 0 : index
    %c0_29 = arith.constant 0 : index
    %c0_30 = arith.constant 0 : index
    %28 = vector.load %arg4[%c0_28, %c0_29, %c0_30] : memref<3x128x128xbf16, #tpu.memory_space<vmem>>, vector<1x128x128xbf16>
    %29 = vector.shape_cast %28 : vector<1x128x128xbf16> to vector<128x128xbf16>
    %cst_31 = arith.constant dense<0.000000e+00> : vector<16x128xf32>
    %30 = tpu.matmul %27, %29, %cst_31 {dimension_numbers = #tpu.dot_dimension_numbers<[1], [0], [0], [1], [0, 0, 1, 1], [], []>} : vector<16x128xbf16>, vector<128x128xbf16>, vector<16x128xf32> -> vector<16x128xf32>
    %c1_32 = arith.constant 1 : index
    %c0_33 = arith.constant 0 : index
    %31 = vector.load %arg7[%c1_32, %c0_33] : memref<18x128xbf16, #tpu.memory_space<vmem>>, vector<16x128xbf16>
    %c1_34 = arith.constant 1 : index
    %c0_35 = arith.constant 0 : index
    %c0_36 = arith.constant 0 : index
    %32 = vector.load %arg4[%c1_34, %c0_35, %c0_36] : memref<3x128x128xbf16, #tpu.memory_space<vmem>>, vector<1x128x128xbf16>
    %33 = vector.shape_cast %32 : vector<1x128x128xbf16> to vector<128x128xbf16>
    %cst_37 = arith.constant dense<0.000000e+00> : vector<16x128xf32>
    %34 = tpu.matmul %31, %33, %cst_37 {dimension_numbers = #tpu.dot_dimension_numbers<[1], [0], [0], [1], [0, 0, 1, 1], [], []>} : vector<16x128xbf16>, vector<128x128xbf16>, vector<16x128xf32> -> vector<16x128xf32>
    %35 = arith.addf %30, %34 : vector<16x128xf32>
    %c2_38 = arith.constant 2 : index
    %c0_39 = arith.constant 0 : index
    %36 = vector.load %arg7[%c2_38, %c0_39] : memref<18x128xbf16, #tpu.memory_space<vmem>>, vector<16x128xbf16>
    %c2_40 = arith.constant 2 : index
    %c0_41 = arith.constant 0 : index
    %c0_42 = arith.constant 0 : index
    %37 = vector.load %arg4[%c2_40, %c0_41, %c0_42] : memref<3x128x128xbf16, #tpu.memory_space<vmem>>, vector<1x128x128xbf16>
    %38 = vector.shape_cast %37 : vector<1x128x128xbf16> to vector<128x128xbf16>
    %cst_43 = arith.constant dense<0.000000e+00> : vector<16x128xf32>
    %39 = tpu.matmul %36, %38, %cst_43 {dimension_numbers = #tpu.dot_dimension_numbers<[1], [0], [0], [1], [0, 0, 1, 1], [], []>} : vector<16x128xbf16>, vector<128x128xbf16>, vector<16x128xf32> -> vector<16x128xf32>
    %40 = arith.addf %35, %39 : vector<16x128xf32>
    %c0_44 = arith.constant 0 : index
    %c1_45 = arith.constant 1 : index
    %c0_46 = arith.constant 0 : index
    %41 = vector.load %arg1[%c0_44, %c1_45, %c0_46] : memref<1x18x128xbf16, #tpu.memory_space<vmem>>, vector<1x16x128xbf16>
    %42 = vector.shape_cast %41 : vector<1x16x128xbf16> to vector<16x128xbf16>
    %43 = arith.extf %42 : vector<16x128xbf16> to vector<16x128xf32>
    %c0_47 = arith.constant 0 : index
    %c0_48 = arith.constant 0 : index
    %44 = vector.load %arg5[%c0_47, %c0_48] : memref<1x128xf32, #tpu.memory_space<vmem>>, vector<1x128xf32>
    %45 = vector.broadcast %44 : vector<1x128xf32> to vector<16x128xf32>
    %46 = arith.addf %40, %45 : vector<16x128xf32>
    %47 = arith.addf %46, %43 : vector<16x128xf32>
    %cst_49 = arith.constant 0.000000e+00 : f32
    %48 = vector.broadcast %cst_49 : f32 to vector<16x128xf32>
    %49 = arith.maximumf %47, %48 : vector<16x128xf32>
    %c0_50 = arith.constant 0 : index
    %c0_51 = arith.constant 0 : index
    %c0_52 = arith.constant 0 : index
    %50 = vector.load %arg6[%c0_50, %c0_51, %c0_52] : memref<1x16x128xf32, #tpu.memory_space<vmem>>, vector<1x16x128xf32>
    %51 = vector.shape_cast %50 : vector<1x16x128xf32> to vector<16x128xf32>
    %52 = vector.shape_cast %49 : vector<16x128xf32> to vector<1x16x128xf32>
    tpu.vector_store %arg6[%c0_50, %c0_51, %c0_52], %52 {strides = array<i32>} : memref<1x16x128xf32, #tpu.memory_space<vmem>>, vector<1x16x128xf32>,
    return
  }
  func.func @transform_0(%arg0: i32) -> (i32, i32, i32) {
    %c0_i32 = arith.constant 0 : i32
    %c0_i32_0 = arith.constant 0 : i32
    %c0_i32_1 = arith.constant 0 : i32
    return %arg0, %c0_i32, %c0_i32_0 : i32, i32, i32
  }
  func.func @transform_1(%arg0: i32) -> (i32, i32, i32) {
    %c0_i32 = arith.constant 0 : i32
    %c0_i32_0 = arith.constant 0 : i32
    %c0_i32_1 = arith.constant 0 : i32
    %c0_i32_2 = arith.constant 0 : i32
    return %c0_i32, %c0_i32_0, %c0_i32_1 : i32, i32, i32
  }
  func.func @transform_2(%arg0: i32) -> (i32, i32) {
    %c0_i32 = arith.constant 0 : i32
    %c0_i32_0 = arith.constant 0 : i32
    %c0_i32_1 = arith.constant 0 : i32
    return %c0_i32, %c0_i32_0 : i32, i32
  }
  func.func @transform_3(%arg0: i32) -> (i32, i32, i32) {
    %c0_i32 = arith.constant 0 : i32
    %c0_i32_0 = arith.constant 0 : i32
    %c0_i32_1 = arith.constant 0 : i32
    %c0_i32_2 = arith.constant 0 : i32
    return %c0_i32, %c0_i32_0, %c0_i32_1 : i32, i32, i32
  }
  func.func @transform_4(%arg0: i32) -> (i32, i32) {
    %c0_i32 = arith.constant 0 : i32
    %c0_i32_0 = arith.constant 0 : i32
    %c0_i32_1 = arith.constant 0 : i32
    return %c0_i32, %c0_i32_0 : i32, i32
  }
  func.func @transform_5(%arg0: i32) -> (i32, i32, i32) {
    %c0_i32 = arith.constant 0 : i32
    %c0_i32_0 = arith.constant 0 : i32
    %c0_i32_1 = arith.constant 0 : i32
    return %arg0, %c0_i32, %c0_i32_0 : i32, i32, i32
  }
}

</mosaic_0001>

<llo_original>
// kernel: tile.13
$region0: #{tile.13}
  #allocation0 [shape = 's32[1]{0}', space=sflag, size = 0x4, scoped, tag = 'scoped memory for tile.13']
  %s0 = inlined_call_operand.vmem [shape: f32[8], index: 0, kind: input, shape index: {}]
  %s1 = inlined_call_operand.vmem [shape: f32[16,8], index: 1, kind: output, shape index: {}]
  // Predicated region
  $region2: #{tile.13} parent=0 // pred_check
    _
  $region3: #{tile.13} parent=0 // pred_check_branch
    %3 = sbr.rel (0) target = $region5
  $region4: #{tile.13} parent=0 // pred_region
    _
  $region5: #{tile.13} parent=0 // pred_fallthru
    _
  %v4 = vld [vmem:[%s0] ss:$0 sm:$0xff]
  %5 = vst [vmem:[%s1] sm:$0xff] %v4
  %s6 = scalar_lea.vmem %s1, 8
  %7 = vst [vmem:[%s6] sm:$0xff] %v4

// kernel: tile.14
$region0: #{tile.14}
  %s0 = inlined_call_operand.vmem [shape: f32[16,8], index: 0, kind: input, shape index: {}]
  %s1 = inlined_call_operand.vmem [shape: f32[1,128], index: 1, kind: output, shape index: {}]
  $region1: #{tile.14} parent=0
    #allocation0 [shape = 'u8[4096]{0}', space=vmem, size = 0x1000, scoped, tag = 'scoped mem for output reshape']
    %v2 = vld [vmem:[%s0] sm:$0x1]
    %vm3 = vcmask 64512
    %4 = vst.msk [vmem:[#allocation0] sm:$0x1] %vm3, %v2
    %s5 = scalar_lea.vmem %s0, 15
    %v6 = vld [vmem:[%s5] sm:$0x1]
    %7 = vrot.lane.b32.xlu0 %v6, 120
    %v8 = vpop.permute.xlu0 %7
    %vm9 = vcmask 1048512
    %10 = vst.msk [vmem:[#allocation0] sm:$0x1] %vm9, %v8
    %s11 = scalar_lea.vmem %s0, 14
    %v12 = vld [vmem:[%s11] sm:$0x1]
    %13 = vrot.lane.b32.xlu0 %v12, 112
    %v14 = vpop.permute.xlu0 %13
    %vm15 = vcmask 982912
    %16 = vst.msk [vmem:[#allocation0] sm:$0x1] %vm15, %v14
    %s17 = scalar_lea.vmem %s0, 13
    %v18 = vld [vmem:[%s17] sm:$0x1]
    %19 = vrot.lane.b32.xlu0 %v18, 104
    %v20 = vpop.permute.xlu0 %19
    %vm21 = vcmask 917312
    %22 = vst.msk [vmem:[#allocation0] sm:$0x1] %vm21, %v20
    %s23 = scalar_lea.vmem %s0, 12
    %v24 = vld [vmem:[%s23] sm:$0x1]
    %25 = vrot.lane.b32.xlu0 %v24, 96
    %v26 = vpop.permute.xlu0 %25
    %vm27 = vcmask 851712
    %28 = vst.msk [vmem:[#allocation0] sm:$0x1] %vm27, %v26
    %s29 = scalar_lea.vmem %s0, 11
    %v30 = vld [vmem:[%s29] sm:$0x1]
    %31 = vrot.lane.b32.xlu0 %v30, 88
    %v32 = vpop.permute.xlu0 %31
    %vm33 = vcmask 786112
    %34 = vst.msk [vmem:[#allocation0] sm:$0x1] %vm33, %v32
    %s35 = scalar_lea.vmem %s0, 10
    %v36 = vld [vmem:[%s35] sm:$0x1]
    %37 = vrot.lane.b32.xlu0 %v36, 80
    %v38 = vpop.permute.xlu0 %37
    %vm39 = vcmask 720512
    %40 = vst.msk [vmem:[#allocation0] sm:$0x1] %vm39, %v38
    %s41 = scalar_lea.vmem %s0, 9
    %v42 = vld [vmem:[%s41] sm:$0x1]
    %43 = vrot.lane.b32.xlu0 %v42, 72
    %v44 = vpop.permute.xlu0 %43
    %vm45 = vcmask 654912
    %46 = vst.msk [vmem:[#allocation0] sm:$0x1] %vm45, %v44
    %s47 = scalar_lea.vmem %s0, 8
    %v48 = vld [vmem:[%s47] sm:$0x1]
    %49 = vrot.lane.b32.xlu0 %v48, 64
    %v50 = vpop.permute.xlu0 %49
    %vm51 = vcmask 589312
    %52 = vst.msk [vmem:[#allocation0] sm:$0x1] %vm51, %v50
    %s53 = scalar_lea.vmem %s0, 7
    %v54 = vld [vmem:[%s53] sm:$0x1]
    %55 = vrot.lane.b32.xlu0 %v54, 56
    %v56 = vpop.permute.xlu0 %55
    %vm57 = vcmask 523712
    %58 = vst.msk [vmem:[#allocation0] sm:$0x1] %vm57, %v56
    %s59 = scalar_lea.vmem %s0, 6
    %v60 = vld [vmem:[%s59] sm:$0x1]
    %61 = vrot.lane.b32.xlu0 %v60, 48
    %v62 = vpop.permute.xlu0 %61
    %vm63 = vcmask 458112
    %64 = vst.msk [vmem:[#allocation0] sm:$0x1] %vm63, %v62
    %s65 = scalar_lea.vmem %s0, 5
    %v66 = vld [vmem:[%s65] sm:$0x1]
    %67 = vrot.lane.b32.xlu0 %v66, 40
    %v68 = vpop.permute.xlu0 %67
    %vm69 = vcmask 392512
    %70 = vst.msk [vmem:[#allocation0] sm:$0x1] %vm69, %v68
    %s71 = scalar_lea.vmem %s0, 4
    %v72 = vld [vmem:[%s71] sm:$0x1]
    %73 = vrot.lane.b32.xlu0 %v72, 32
    %v74 = vpop.permute.xlu0 %73
    %vm75 = vcmask 326912
    %76 = vst.msk [vmem:[#allocation0] sm:$0x1] %vm75, %v74
    %s77 = scalar_lea.vmem %s0, 3
    %v78 = vld [vmem:[%s77] sm:$0x1]
    %79 = vrot.lane.b32.xlu0 %v78, 24
    %v80 = vpop.permute.xlu0 %79
    %vm81 = vcmask 261312
    %82 = vst.msk [vmem:[#allocation0] sm:$0x1] %vm81, %v80
    %s83 = scalar_lea.vmem %s0, 2
    %v84 = vld [vmem:[%s83] sm:$0x1]
    %85 = vrot.lane.b32.xlu0 %v84, 16
    %v86 = vpop.permute.xlu0 %85
    %vm87 = vcmask 195712
    %88 = vst.msk [vmem:[#allocation0] sm:$0x1] %vm87, %v86
    %s89 = scalar_lea.vmem %s0, 1
    %v90 = vld [vmem:[%s89] sm:$0x1]
    %91 = vrot.lane.b32.xlu0 %v90, 8
    %v92 = vpop.permute.xlu0 %91
    %vm93 = vcmask 130112
    %94 = vst.msk [vmem:[#allocation0] sm:$0x1] %vm93, %v92
    %s96 = sshllo.u32 0, 1
    %v98 = vld [vmem:[#allocation0] sm:%s96]
    %s99 = sshllo.u32 0, 1
    %100 = vst [vmem:[%s1] sm:%s99] %v98

// kernel: basic_block_forward.1
$region0: #{basic_block_forward.1}
  #allocation0 [shape = 'u32[]', space=smem, size = 0x4, offset = 0x4, fixed_abs, tag = 'smem constant byte address 0x4 - core index']
  #allocation1 [shape = 'u32[144,128]{1,0:T(1,128)}', space=vmem, size = 0x12000, scoped, tag = 'internal scratch']
  #allocation2 [shape = 'bf16[18,128]{1,0:T(8,128)(2,1)}', space=vmem, size = 0x1800, scoped, tag = 'scratch operand']
  %s0 = inlined_call_operand.vmem [shape: bf16[2,18,128], index: 0, kind: input, shape index: {}]
  %s1 = inlined_call_operand.vmem [shape: bf16[3,128,128], index: 1, kind: input, shape index: {}]
  %s2 = inlined_call_operand.vmem [shape: f32[1,128], index: 2, kind: input, shape index: {}]
  %s3 = inlined_call_operand.vmem [shape: bf16[3,128,128], index: 3, kind: input, shape index: {}]
  %s4 = inlined_call_operand.vmem [shape: f32[1,128], index: 4, kind: input, shape index: {}]
  %s5 = inlined_call_operand.vmem [shape: f32[2,16,128], index: 5, kind: output, shape index: {}]
  %s6 = sld [smem:[#allocation0]]
  $region53: #{basic_block_forward.1} parent=0
    _
  %s8 = ssub.s32 1, %s6
  %s9 = scalar_select 0, %s8, %s6
  loop: start=0, step=1, limit=4
  $region2: #{basic_block_forward.1} parent=0 // loop_pre_header
    _
  $region3: #{basic_block_forward.1} parent=0 // loop_header
    %s11 = sphi 0, %s15
    %p12 = scmp.ge.s32.totalorder %s11, 4
    %s21 = sphi 0, %s23
    %s24 = sphi 0, %s21
    %s25 = sphi 0, %s24
    %s41 = sphi 0, %s25
    %s45 = sphi 0, %s45
    %s47 = sphi 0, %s45
    %s48 = sphi 0, %s47
    %s62 = sphi 0, %s48
    %s66 = sphi 0, %s66
    %s68 = sphi 0, %s66
    %s69 = sphi 0, %s68
    %s83 = sphi 0, %s69
    %s87 = sphi 0, %s87
    %s89 = sphi 0, %s87
    %s90 = sphi 0, %s89
    %s104 = sphi 0, %s90
    %s108 = sphi 0, %s108
    %s110 = sphi 0, %s108
    %s111 = sphi 0, %s110
    %s125 = sphi 0, %s111
    %s131 = sphi 0, %s133
    %s134 = sphi 0, %s131
    %s135 = sphi 0, %s134
    %s151 = sphi 0, %s135
  $region4: #{basic_block_forward.1} parent=0 // loop_header_branch
    %14 = sbr.rel (%p12) target = $region8
  $region5: #{basic_block_forward.1} parent=0 // loop_body
    %s16 = ssub.s32 %s11, 1
    %s17 = ssub.s32 %s11, 2
    %s18 = sadd.s32 %s11, 1
    %s19 = ssub.s32 %s11, %s18
    %p20 = scmp.eq.s32.totalorder %s19, 0
    %s22 = sadd.s32 %s21, 1
    %s23 = scalar_select %p20, %s21, %s22
    %p26 = pneg %p20
    %p27 = scmp.eq.s32.totalorder %s11, 1
    %p28 = por %p26, %p27
    %p29 = scmp.ne.s32.totalorder %s21, %s24
    %p30 = scmp.eq.s32.totalorder %s11, 0
    %p31 = por %p29, %p30
    %p32 = scmp.ne.s32.totalorder %s21, %s24
    %p33 = scmp.eq.s32.totalorder %s16, 1
    %p34 = por %p32, %p33
    %p35 = scmp.ne.s32.totalorder %s24, %s25
    %p36 = scmp.eq.s32.totalorder %s16, 0
    %p37 = por %p35, %p36
    %p38 = scmp.ne.s32.totalorder %s24, %s25
    %p39 = scmp.eq.s32.totalorder %s17, 1
    %p40 = por %p38, %p39
    %p42 = scmp.ne.s32.totalorder %s25, %s41
    %p43 = scmp.eq.s32.totalorder %s17, 0
    %p44 = por %p42, %p43
    %s46 = sadd.s32 %s45, 1
    %p49 = scmp.eq.s32.totalorder %s11, 1
    %p50 = scmp.ne.s32.totalorder %s45, %s47
    %p51 = scmp.eq.s32.totalorder %s11, 0
    %p52 = por %p50, %p51
    %p53 = scmp.ne.s32.totalorder %s45, %s47
    %p54 = scmp.eq.s32.totalorder %s16, 1
    %p55 = por %p53, %p54
    %p56 = scmp.ne.s32.totalorder %s47, %s48
    %p57 = scmp.eq.s32.totalorder %s16, 0
    %p58 = por %p56, %p57
    %p59 = scmp.ne.s32.totalorder %s47, %s48
    %p60 = scmp.eq.s32.totalorder %s17, 1
    %p61 = por %p59, %p60
    %p63 = scmp.ne.s32.totalorder %s48, %s62
    %p64 = scmp.eq.s32.totalorder %s17, 0
    %p65 = por %p63, %p64
    %s67 = sadd.s32 %s66, 1
    %p70 = scmp.eq.s32.totalorder %s11, 1
    %p71 = scmp.ne.s32.totalorder %s66, %s68
    %p72 = scmp.eq.s32.totalorder %s11, 0
    %p73 = por %p71, %p72
    %p74 = scmp.ne.s32.totalorder %s66, %s68
    %p75 = scmp.eq.s32.totalorder %s16, 1
    %p76 = por %p74, %p75
    %p77 = scmp.ne.s32.totalorder %s68, %s69
    %p78 = scmp.eq.s32.totalorder %s16, 0
    %p79 = por %p77, %p78
    %p80 = scmp.ne.s32.totalorder %s68, %s69
    %p81 = scmp.eq.s32.totalorder %s17, 1
    %p82 = por %p80, %p81
    %p84 = scmp.ne.s32.totalorder %s69, %s83
    %p85 = scmp.eq.s32.totalorder %s17, 0
    %p86 = por %p84, %p85
    %s88 = sadd.s32 %s87, 1
    %p91 = scmp.eq.s32.totalorder %s11, 1
    %p92 = scmp.ne.s32.totalorder %s87, %s89
    %p93 = scmp.eq.s32.totalorder %s11, 0
    %p94 = por %p92, %p93
    %p95 = scmp.ne.s32.totalorder %s87, %s89
    %p96 = scmp.eq.s32.totalorder %s16, 1
    %p97 = por %p95, %p96
    %p98 = scmp.ne.s32.totalorder %s89, %s90
    %p99 = scmp.eq.s32.totalorder %s16, 0
    %p100 = por %p98, %p99
    %p101 = scmp.ne.s32.totalorder %s89, %s90
    %p102 = scmp.eq.s32.totalorder %s17, 1
    %p103 = por %p101, %p102
    %p105 = scmp.ne.s32.totalorder %s90, %s104
    %p106 = scmp.eq.s32.totalorder %s17, 0
    %p107 = por %p105, %p106
    %s109 = sadd.s32 %s108, 1
    %p112 = scmp.eq.s32.totalorder %s11, 1
    %p113 = scmp.ne.s32.totalorder %s108, %s110
    %p114 = scmp.eq.s32.totalorder %s11, 0
    %p115 = por %p113, %p114
    %p116 = scmp.ne.s32.totalorder %s108, %s110
    %p117 = scmp.eq.s32.totalorder %s16, 1
    %p118 = por %p116, %p117
    %p119 = scmp.ne.s32.totalorder %s110, %s111
    %p120 = scmp.eq.s32.totalorder %s16, 0
    %p121 = por %p119, %p120
    %p122 = scmp.ne.s32.totalorder %s110, %s111
    %p123 = scmp.eq.s32.totalorder %s17, 1
    %p124 = por %p122, %p123
    %p126 = scmp.ne.s32.totalorder %s111, %s125
    %p127 = scmp.eq.s32.totalorder %s17, 0
    %p128 = por %p126, %p127
    %s129 = ssub.s32 %s11, %s18
    %p130 = scmp.eq.s32.totalorder %s129, 0
    %s132 = sadd.s32 %s131, 1
    %s133 = scalar_select %p130, %s131, %s132
    %p136 = pneg %p130
    %p137 = scmp.eq.s32.totalorder %s11, 1
    %p138 = por %p136, %p137
    %p139 = scmp.ne.s32.totalorder %s131, %s134
    %p140 = scmp.eq.s32.totalorder %s11, 0
    %p141 = por %p139, %p140
    %p142 = scmp.ne.s32.totalorder %s131, %s134
    %p143 = scmp.eq.s32.totalorder %s16, 1
    %p144 = por %p142, %p143
    %p145 = scmp.ne.s32.totalorder %s134, %s135
    %p146 = scmp.eq.s32.totalorder %s16, 0
    %p147 = por %p145, %p146
    %p148 = scmp.ne.s32.totalorder %s134, %s135
    %p149 = scmp.eq.s32.totalorder %s17, 1
    %p150 = por %p148, %p149
    %p152 = scmp.ne.s32.totalorder %s135, %s151
    %p153 = scmp.eq.s32.totalorder %s17, 0
    %p154 = por %p152, %p153
    %p155 = scmp.le.s32.totalorder 1, %s11
    %p156 = scmp.lt.s32.totalorder %s11, 3
    %p157 = pnand %p155, %p156
    %p158 = pneg %p157
    // Predicated region
    $region9: #{basic_block_forward.1} parent=5 // pred_check
      _
    $region10: #{basic_block_forward.1} parent=5 // pred_check_branch
      %160 = sbr.rel (%p157) target = $region12
    $region11: #{basic_block_forward.1} parent=5 // pred_region
      %s161 = ssub.s32 %s11, 1
      // Predicated region
      $region13: #{basic_block_forward.1} parent=11 // pred_check
        %p162 = pneg %p58
      $region14: #{basic_block_forward.1} parent=11 // pred_check_branch
        %164 = sbr.rel (%p162) target = $region16
      $region15: #{basic_block_forward.1} parent=11 // pred_region
        _
      $region16: #{basic_block_forward.1} parent=11 // pred_fallthru
        _
      // Predicated region
      $region17: #{basic_block_forward.1} parent=11 // pred_check
        %p165 = pneg %p79
      $region18: #{basic_block_forward.1} parent=11 // pred_check_branch
        %167 = sbr.rel (%p165) target = $region20
      $region19: #{basic_block_forward.1} parent=11 // pred_region
        _
      $region20: #{basic_block_forward.1} parent=11 // pred_fallthru
        _
      // Predicated region
      $region21: #{basic_block_forward.1} parent=11 // pred_check
        %p168 = pneg %p100
      $region22: #{basic_block_forward.1} parent=11 // pred_check_branch
        %170 = sbr.rel (%p168) target = $region24
      $region23: #{basic_block_forward.1} parent=11 // pred_region
        _
      $region24: #{basic_block_forward.1} parent=11 // pred_fallthru
        _
      // Predicated region
      $region25: #{basic_block_forward.1} parent=11 // pred_check
        %p171 = pneg %p121
      $region26: #{basic_block_forward.1} parent=11 // pred_check_branch
        %173 = sbr.rel (%p171) target = $region28
      $region27: #{basic_block_forward.1} parent=11 // pred_region
        _
      $region28: #{basic_block_forward.1} parent=11 // pred_fallthru
        _
    $region12: #{basic_block_forward.1} parent=5 // pred_fallthru
      _
    %p174 = scmp.lt.s32.totalorder %s11, 2
    // Predicated region
    $region29: #{basic_block_forward.1} parent=5 // pred_check
      %p175 = pneg %p174
    $region30: #{basic_block_forward.1} parent=5 // pred_check_branch
      %177 = sbr.rel (%p175) target = $region32
    $region31: #{basic_block_forward.1} parent=5 // pred_region
      // Predicated region
      $region33: #{basic_block_forward.1} parent=31 // pred_check
        %p178 = pneg %p31
      $region34: #{basic_block_forward.1} parent=31 // pred_check_branch
        %180 = sbr.rel (%p178) target = $region36
      $region35: #{basic_block_forward.1} parent=31 // pred_region
        %p181 = scmp.lt.s32.totalorder %s11, 1
        %s182 = scalar_select %p181, %s11, 1
        %s183 = smul.addr %s182, 3
        %s184 = smul.addr %s183, 4
        %s185 = scalar_lea.vmem %s0, %s184
      $region36: #{basic_block_forward.1} parent=31 // pred_fallthru
        _
    $region32: #{basic_block_forward.1} parent=5 // pred_fallthru
      _
    %p186 = scmp.le.s32.totalorder 1, %s11
    %p187 = scmp.lt.s32.totalorder %s11, 3
    %p188 = pnand %p186, %p187
    %p189 = pneg %p188
    // Predicated region
    $region37: #{basic_block_forward.1} parent=5 // pred_check
      _
    $region38: #{basic_block_forward.1} parent=5 // pred_check_branch
      %191 = sbr.rel (%p188) target = $region40
    $region39: #{basic_block_forward.1} parent=5 // pred_region
      %s192 = ssub.s32 %s11, 1
      %p193 = scmp.lt.s32.totalorder %s16, 1
      %s194 = scalar_select %p193, %s16, 1
      %s195 = smul.addr %s194, 3
      %s196 = smul.addr %s195, 4
      %s197 = scalar_lea.vmem %s0, %s196
      %p198 = pneg %p37
      %p199 = pneg %p34
      %p200 = pneg %p58
      %p201 = pneg %p55
      %p202 = pneg %p79
      %p203 = pneg %p76
      %p204 = pneg %p100
      %p205 = pneg %p97
      %p206 = pneg %p121
      %p207 = pneg %p118
      %p208 = pneg %p147
      %p209 = pneg %p144
      %p210 = scmp.lt.s32.totalorder %s16, 1
      %s211 = scalar_select %p210, %s16, 1
      %s212 = smul.addr %s211, 2
      %s213 = smul.addr %s212, 8
      %s214 = scalar_lea.vmem %s5, %s213
      %p215 = scmp.lt.s32.totalorder %s16, 1
      %s216 = scalar_select %p215, %s16, 1
      %s217 = smul.addr %s216, 3
      %s218 = smul.addr %s217, 4
      %s219 = scalar_lea.vmem %s0, %s218
      %p220 = scmp.lt.s32.totalorder %s16, 1
      %s221 = scalar_select %p220, %s16, 1
      %s222 = smul.addr %s221, 2
      %s223 = smul.addr %s222, 8
      %s224 = scalar_lea.vmem %s5, %s223
      %vm226 = vcmask 1040384
      %vm227 = vsmask.f32 256
      %vm228 = vmand %vm226, %vm227
      %v229 = vld [vmem:[#allocation2] sm:$0x1]
      %v230 = vsel %vm228, 0, %v229
      %231 = vst [vmem:[#allocation2] sm:$0x1] %v230
      %vm232 = vsmask.f32 7938
      %vm233 = vmand %vm226, %vm232
      %v234 = vld [vmem:[#allocation2 + $0x8] sm:$0x1]
      %v235 = vsel %vm233, 0, %v234
      %236 = vst [vmem:[#allocation2 + $0x8] sm:$0x1] %v235
      %v237 = vld [vmem:[%s219] sm:$0xf]
      %v238 = vld [vmem:[%s219 + $0x4] sm:$0xf]
      %v239 = vld [vmem:[%s1] sm:$0xf]
      %v240 = vld [vmem:[%s1 + $0x4] sm:$0xf]
      %v241 = vld [vmem:[%s1 + $0x8] sm:$0xf]
      %v242 = vld [vmem:[%s1 + $0xc] sm:$0xf]
      %v243 = vld [vmem:[%s1 + $0x10] sm:$0xf]
      %v244 = vld [vmem:[%s1 + $0x14] sm:$0xf]
      %v245 = vld [vmem:[%s1 + $0x18] sm:$0xf]
      %v246 = vld [vmem:[%s1 + $0x1c] sm:$0xf]
      %v247 = vld [vmem:[%s1 + $0x20] sm:$0xf]
      %v248 = vld [vmem:[%s1 + $0x24] sm:$0xf]
      %v249 = vld [vmem:[%s1 + $0x28] sm:$0xf]
      %v250 = vld [vmem:[%s1 + $0x2c] sm:$0xf]
      %v251 = vld [vmem:[%s1 + $0x30] sm:$0xf]
      %v252 = vld [vmem:[%s1 + $0x34] sm:$0xf]
      %v253 = vld [vmem:[%s1 + $0x38] sm:$0xf]
      %v254 = vld [vmem:[%s1 + $0x3c] sm:$0xf]
      %v255 = vld [vmem:[%s219 + $0x8] sm:$0x1]
      %s256 = scalar_lea.vmem %s1, 64
      %v257 = vld [vmem:[%s256] sm:$0xf]
      %v258 = vld [vmem:[%s256 + $0x4] sm:$0xf]
      %v259 = vld [vmem:[%s256 + $0x8] sm:$0xf]
      %v260 = vld [vmem:[%s256 + $0xc] sm:$0xf]
      %v261 = vld [vmem:[%s256 + $0x10] sm:$0xf]
      %v262 = vld [vmem:[%s256 + $0x14] sm:$0xf]
      %v263 = vld [vmem:[%s256 + $0x18] sm:$0xf]
      %v264 = vld [vmem:[%s256 + $0x1c] sm:$0xf]
      %v265 = vld [vmem:[%s256 + $0x20] sm:$0xf]
      %v266 = vld [vmem:[%s256 + $0x24] sm:$0xf]
      %v267 = vld [vmem:[%s256 + $0x28] sm:$0xf]
      %v268 = vld [vmem:[%s256 + $0x2c] sm:$0xf]
      %v269 = vld [vmem:[%s256 + $0x30] sm:$0xf]
      %v270 = vld [vmem:[%s256 + $0x34] sm:$0xf]
      %v271 = vld [vmem:[%s256 + $0x38] sm:$0xf]
      %v272 = vld [vmem:[%s256 + $0x3c] sm:$0xf]
      %v276 = vunpack.c.l.b16 %v237
      %v277 = vunpack.c.l.b16 %v238
      %v278 = vunpack.c.l.b16 %v255
      %v279 = vpack.c.b16 %v277, %v276
      %v280 = vpack.c.b16 %v278, %v278
      %vm281 = vsmask.f32 7424
      %v283 = vshrl.u32 %v279, 16
      %v285 = vshll.u32 %v279, 16
      %v287 = vrot.slane %v285, 1
      %v288 = vor.u32 %v283, %v287
      %v290 = vshll.u32 %v280, 16
      %v292 = vrot.slane %v290, 1
      %v293 = vsel %vm281, %v288, %v292
      %v311 = vunpack.c.l.b16 %v257
      %v312 = vunpack.c.l.b16 %v258
      %v313 = vunpack.c.l.b16 %v259
      %v314 = vunpack.c.l.b16 %v260
      %v315 = vunpack.c.l.b16 %v261
      %v316 = vunpack.c.l.b16 %v262
      %v317 = vunpack.c.l.b16 %v263
      %v318 = vunpack.c.l.b16 %v264
      %v319 = vunpack.c.l.b16 %v265
      %v320 = vunpack.c.l.b16 %v266
      %v321 = vunpack.c.l.b16 %v267
      %v322 = vunpack.c.l.b16 %v268
      %v323 = vunpack.c.l.b16 %v269
      %v324 = vunpack.c.l.b16 %v270
      %v325 = vunpack.c.l.b16 %v271
      %v326 = vunpack.c.l.b16 %v272
      %v327 = vpack.c.b16 %v312, %v311
      %v328 = vpack.c.b16 %v314, %v313
      %v329 = vpack.c.b16 %v316, %v315
      %v330 = vpack.c.b16 %v318, %v317
      %v331 = vpack.c.b16 %v320, %v319
      %v332 = vpack.c.b16 %v322, %v321
      %v333 = vpack.c.b16 %v324, %v323
      %v334 = vpack.c.b16 %v326, %v325
      %343 = vmatprep.subr.bf16.mxu0 0
      %344 = vmatpush1.bf16.msra.mxu0 %v327
      %345 = vmatprep.subr.bf16.mxu0 0
      %346 = vmatpush1.bf16.msra.mxu0 %v328
      %347 = vmatprep.subr.bf16.mxu0 0
      %348 = vmatpush1.bf16.msra.mxu0 %v329
      %349 = vmatprep.subr.bf16.mxu0 0
      %350 = vmatpush1.bf16.msra.mxu0 %v330
      %351 = vmatprep.subr.bf16.mxu0 0
      %352 = vmatpush1.bf16.msra.mxu0 %v331
      %353 = vmatprep.subr.bf16.mxu0 0
      %354 = vmatpush1.bf16.msra.mxu0 %v332
      %355 = vmatprep.subr.bf16.mxu0 0
      %356 = vmatpush1.bf16.msra.mxu0 %v333
      %357 = vmatprep.subr.bf16.mxu0 0
      %358 = vmatpush1.bf16.msra.mxu0 %v334
      %359 = vmatprep.subr.bf16.mxu0 0
      %360 = vmatpush1.bf16.msra.mxu0 0
      %361 = vmatprep.subr.bf16.mxu0 0
      %362 = vmatpush1.bf16.msra.mxu0 0
      %363 = vmatprep.subr.bf16.mxu0 0
      %364 = vmatpush1.bf16.msra.mxu0 0
      %365 = vmatprep.subr.bf16.mxu0 0
      %366 = vmatpush1.bf16.msra.mxu0 0
      %367 = vmatprep.subr.bf16.mxu0 0
      %368 = vmatpush1.bf16.msra.mxu0 0
      %369 = vmatprep.subr.bf16.mxu0 0
      %370 = vmatpush1.bf16.msra.mxu0 0
      %371 = vmatprep.subr.bf16.mxu0 0
      %372 = vmatpush1.bf16.msra.mxu0 0
      %373 = vmatprep.subr.bf16.mxu0 0
      %374 = vmatpush1.bf16.msra.mxu0 0
      %375 = vmatprep.mubr.bf16.mxu0 0
      %376 = vmatmul.mubr.bf16.gmra.mrb[0].mxu0 %v293
      %v377 = vpop.f32.mrb[0].mxu0
      %v378 = vadd.f32 0.0, %v377
      %v379 = vpop.f32.mrb[0].mxu0
      %v380 = vpop.f32.mrb[0].mxu0
      %v381 = vadd.f32 0.0, %v380
      %v382 = vpop.f32.mrb[0].mxu0
      %383 = vdwg.mxu0
      %v401 = vunpack.c.l.b16 %v239
      %v402 = vunpack.c.l.b16 %v240
      %v403 = vunpack.c.l.b16 %v241
      %v404 = vunpack.c.l.b16 %v242
      %v405 = vunpack.c.l.b16 %v243
      %v406 = vunpack.c.l.b16 %v244
      %v407 = vunpack.c.l.b16 %v245
      %v408 = vunpack.c.l.b16 %v246
      %v409 = vunpack.c.l.b16 %v247
      %v410 = vunpack.c.l.b16 %v248
      %v411 = vunpack.c.l.b16 %v249
      %v412 = vunpack.c.l.b16 %v250
      %v413 = vunpack.c.l.b16 %v251
      %v414 = vunpack.c.l.b16 %v252
      %v415 = vunpack.c.l.b16 %v253
      %v416 = vunpack.c.l.b16 %v254
      %v417 = vpack.c.b16 %v402, %v401
      %v418 = vpack.c.b16 %v404, %v403
      %v419 = vpack.c.b16 %v406, %v405
      %v420 = vpack.c.b16 %v408, %v407
      %v421 = vpack.c.b16 %v410, %v409
      %v422 = vpack.c.b16 %v412, %v411
      %v423 = vpack.c.b16 %v414, %v413
      %v424 = vpack.c.b16 %v416, %v415
      %433 = vmatprep.subr.bf16.mxu0 0
      %434 = vmatpush1.bf16.msra.mxu0 %v417
      %435 = vmatprep.subr.bf16.mxu0 0
      %436 = vmatpush1.bf16.msra.mxu0 %v418
      %437 = vmatprep.subr.bf16.mxu0 0
      %438 = vmatpush1.bf16.msra.mxu0 %v419
      %439 = vmatprep.subr.bf16.mxu0 0
      %440 = vmatpush1.bf16.msra.mxu0 %v420
      %441 = vmatprep.subr.bf16.mxu0 0
      %442 = vmatpush1.bf16.msra.mxu0 %v421
      %443 = vmatprep.subr.bf16.mxu0 0
      %444 = vmatpush1.bf16.msra.mxu0 %v422
      %445 = vmatprep.subr.bf16.mxu0 0
      %446 = vmatpush1.bf16.msra.mxu0 %v423
      %447 = vmatprep.subr.bf16.mxu0 0
      %448 = vmatpush1.bf16.msra.mxu0 %v424
      %449 = vmatprep.subr.bf16.mxu0 0
      %450 = vmatpush1.bf16.msra.mxu0 0
      %451 = vmatprep.subr.bf16.mxu0 0
      %452 = vmatpush1.bf16.msra.mxu0 0
      %453 = vmatprep.subr.bf16.mxu0 0
      %454 = vmatpush1.bf16.msra.mxu0 0
      %455 = vmatprep.subr.bf16.mxu0 0
      %456 = vmatpush1.bf16.msra.mxu0 0
      %457 = vmatprep.subr.bf16.mxu0 0
      %458 = vmatpush1.bf16.msra.mxu0 0
      %459 = vmatprep.subr.bf16.mxu0 0
      %460 = vmatpush1.bf16.msra.mxu0 0
      %461 = vmatprep.subr.bf16.mxu0 0
      %462 = vmatpush1.bf16.msra.mxu0 0
      %463 = vmatprep.subr.bf16.mxu0 0
      %464 = vmatpush1.bf16.msra.mxu0 0
      %465 = vmatprep.mubr.bf16.mxu0 0
      %466 = vmatmul.mubr.bf16.gmra.mrb[0].mxu0 %v279
      %v467 = vpop.f32.mrb[0].mxu0
      %v468 = vadd.f32 %v378, %v467
      %v469 = vpop.f32.mrb[0].mxu0
      %v470 = vpop.f32.mrb[0].mxu0
      %v471 = vadd.f32 %v381, %v470
      %v472 = vpop.f32.mrb[0].mxu0
      %473 = vdwg.mxu0
      %v474 = vld [vmem:[%s219] sm:$0xe]
      %s475 = scalar_lea.vmem %s1, 128
      %v476 = vld [vmem:[%s475] sm:$0xf]
      %v477 = vld [vmem:[%s475 + $0x4] sm:$0xf]
      %v478 = vld [vmem:[%s475 + $0x8] sm:$0xf]
      %v479 = vld [vmem:[%s475 + $0xc] sm:$0xf]
      %v480 = vld [vmem:[%s475 + $0x10] sm:$0xf]
      %v481 = vld [vmem:[%s475 + $0x14] sm:$0xf]
      %v482 = vld [vmem:[%s475 + $0x18] sm:$0xf]
      %v483 = vld [vmem:[%s475 + $0x1c] sm:$0xf]
      %v484 = vld [vmem:[%s475 + $0x20] sm:$0xf]
      %v485 = vld [vmem:[%s475 + $0x24] sm:$0xf]
      %v486 = vld [vmem:[%s475 + $0x28] sm:$0xf]
      %v487 = vld [vmem:[%s475 + $0x2c] sm:$0xf]
      %v488 = vld [vmem:[%s475 + $0x30] sm:$0xf]
      %v489 = vld [vmem:[%s475 + $0x34] sm:$0xf]
      %v490 = vld [vmem:[%s475 + $0x38] sm:$0xf]
      %v491 = vld [vmem:[%s475 + $0x3c] sm:$0xf]
      %v493 = vunpack.c.l.b16 %v474
      %v494 = vpack.c.b16 %v277, %v493
      %vm495 = vcmask 1046528
      %v496 = vrot.slane %v494, 1
      %v497 = vrot.slane %v280, 1
      %v498 = vsel %vm495, %v496, %v497
      %v516 = vunpack.c.l.b16 %v476
      %v517 = vunpack.c.l.b16 %v477
      %v518 = vunpack.c.l.b16 %v478
      %v519 = vunpack.c.l.b16 %v479
      %v520 = vunpack.c.l.b16 %v480
      %v521 = vunpack.c.l.b16 %v481
      %v522 = vunpack.c.l.b16 %v482
      %v523 = vunpack.c.l.b16 %v483
      %v524 = vunpack.c.l.b16 %v484
      %v525 = vunpack.c.l.b16 %v485
      %v526 = vunpack.c.l.b16 %v486
      %v527 = vunpack.c.l.b16 %v487
      %v528 = vunpack.c.l.b16 %v488
      %v529 = vunpack.c.l.b16 %v489
      %v530 = vunpack.c.l.b16 %v490
      %v531 = vunpack.c.l.b16 %v491
      %v532 = vpack.c.b16 %v517, %v516
      %v533 = vpack.c.b16 %v519, %v518
      %v534 = vpack.c.b16 %v521, %v520
      %v535 = vpack.c.b16 %v523, %v522
      %v536 = vpack.c.b16 %v525, %v524
      %v537 = vpack.c.b16 %v527, %v526
      %v538 = vpack.c.b16 %v529, %v528
      %v539 = vpack.c.b16 %v531, %v530
      %548 = vmatprep.subr.bf16.mxu0 0
      %549 = vmatpush1.bf16.msra.mxu0 %v532
      %550 = vmatprep.subr.bf16.mxu0 0
      %551 = vmatpush1.bf16.msra.mxu0 %v533
      %552 = vmatprep.subr.bf16.mxu0 0
      %553 = vmatpush1.bf16.msra.mxu0 %v534
      %554 = vmatprep.subr.bf16.mxu0 0
      %555 = vmatpush1.bf16.msra.mxu0 %v535
      %556 = vmatprep.subr.bf16.mxu0 0
      %557 = vmatpush1.bf16.msra.mxu0 %v536
      %558 = vmatprep.subr.bf16.mxu0 0
      %559 = vmatpush1.bf16.msra.mxu0 %v537
      %560 = vmatprep.subr.bf16.mxu0 0
      %561 = vmatpush1.bf16.msra.mxu0 %v538
      %562 = vmatprep.subr.bf16.mxu0 0
      %563 = vmatpush1.bf16.msra.mxu0 %v539
      %564 = vmatprep.subr.bf16.mxu0 0
      %565 = vmatpush1.bf16.msra.mxu0 0
      %566 = vmatprep.subr.bf16.mxu0 0
      %567 = vmatpush1.bf16.msra.mxu0 0
      %568 = vmatprep.subr.bf16.mxu0 0
      %569 = vmatpush1.bf16.msra.mxu0 0
      %570 = vmatprep.subr.bf16.mxu0 0
      %571 = vmatpush1.bf16.msra.mxu0 0
      %572 = vmatprep.subr.bf16.mxu0 0
      %573 = vmatpush1.bf16.msra.mxu0 0
      %574 = vmatprep.subr.bf16.mxu0 0
      %575 = vmatpush1.bf16.msra.mxu0 0
      %576 = vmatprep.subr.bf16.mxu0 0
      %577 = vmatpush1.bf16.msra.mxu0 0
      %578 = vmatprep.subr.bf16.mxu0 0
      %579 = vmatpush1.bf16.msra.mxu0 0
      %580 = vmatprep.mubr.bf16.mxu0 0
      %581 = vmatmul.mubr.bf16.gmra.mrb[0].mxu0 %v498
      %v582 = vpop.f32.mrb[0].mxu0
      %v583 = vadd.f32 0.0, %v582
      %v584 = vpop.f32.mrb[0].mxu0
      %v585 = vpop.f32.mrb[0].mxu0
      %v586 = vadd.f32 0.0, %v585
      %v587 = vpop.f32.mrb[0].mxu0
      %588 = vdwg.mxu0
      %v589 = vadd.f32 %v468, %v583
      %v590 = vadd.f32 %v471, %v586
      %v591 = vld [vmem:[%s2] sm:$0x1]
      %v593 = vlaneseq
      %v594 = vshrl.u32 %v593, 7
      %v595 = vsub.s32 0, %v594
      %v596 = vrot.slane %v591, %v595
      %v598 = vadd.f32 %v589, %v596
      %v599 = vadd.f32 %v590, %v596
      %v600 = vmax.f32 %v598, 0.0
      %v601 = vmax.f32 %v599, 0.0
      %v602 = vpack.c.bf16 %v601, %v600
      %v604 = vunpack.c.l.b16 %v602
      %v605 = vunpack.c.h.b16 %v602
      %v606 = vpack.c.b16 %v604, %v604
      %v607 = vpack.c.b16 %v605, %v605
      %vm608 = vsmask.f32 4368
      %vm609 = vmor %vm227, %vm608
      %v611 = vshrl.u32 %v606, 16
      %v613 = vrot.slane %v611, 7
      %v614 = vshll.u32 %v606, 16
      %v616 = vor.u32 %v613, %v614
      %v617 = vrot.slane %v613, 4
      %v619 = vshrl.u32 %v607, 16
      %v621 = vrot.slane %v619, 7
      %v622 = vshll.u32 %v607, 16
      %v624 = vor.u32 %v621, %v622
      %v625 = vsel %vm609, %v617, %v624
      %v626 = vrot.slane %v621, 4
      %vm630 = vcmask 1043456
      %vm631 = vmand %vm630, %vm232
      %v632 = vld [vmem:[#allocation2] sm:$0xf]
      %v633 = vsel %vm631, %v616, %v632
      %634 = vst [vmem:[#allocation2] sm:$0xf] %v633
      %635 = vst [vmem:[#allocation2 + $0x4] sm:$0xf] %v625
      %v636 = vld [vmem:[#allocation2 + $0x8] sm:$0x1]
      %v637 = vsel %vm228, %v626, %v636
      %638 = vst [vmem:[#allocation2 + $0x8] sm:$0x1] %v637
      %v639 = vld [vmem:[#allocation2] sm:$0xf]
      %v640 = vld [vmem:[#allocation2 + $0x4] sm:$0xf]
      %v641 = vld [vmem:[%s3] sm:$0xf]
      %v642 = vld [vmem:[%s3 + $0x4] sm:$0xf]
      %v643 = vld [vmem:[%s3 + $0x8] sm:$0xf]
      %v644 = vld [vmem:[%s3 + $0xc] sm:$0xf]
      %v645 = vld [vmem:[%s3 + $0x10] sm:$0xf]
      %v646 = vld [vmem:[%s3 + $0x14] sm:$0xf]
      %v647 = vld [vmem:[%s3 + $0x18] sm:$0xf]
      %v648 = vld [vmem:[%s3 + $0x1c] sm:$0xf]
      %v649 = vld [vmem:[%s3 + $0x20] sm:$0xf]
      %v650 = vld [vmem:[%s3 + $0x24] sm:$0xf]
      %v651 = vld [vmem:[%s3 + $0x28] sm:$0xf]
      %v652 = vld [vmem:[%s3 + $0x2c] sm:$0xf]
      %v653 = vld [vmem:[%s3 + $0x30] sm:$0xf]
      %v654 = vld [vmem:[%s3 + $0x34] sm:$0xf]
      %v655 = vld [vmem:[%s3 + $0x38] sm:$0xf]
      %v656 = vld [vmem:[%s3 + $0x3c] sm:$0xf]
      %v657 = vld [vmem:[#allocation2 + $0x8] sm:$0x1]
      %s658 = scalar_lea.vmem %s3, 64
      %v659 = vld [vmem:[%s658] sm:$0xf]
      %v660 = vld [vmem:[%s658 + $0x4] sm:$0xf]
      %v661 = vld [vmem:[%s658 + $0x8] sm:$0xf]
      %v662 = vld [vmem:[%s658 + $0xc] sm:$0xf]
      %v663 = vld [vmem:[%s658 + $0x10] sm:$0xf]
      %v664 = vld [vmem:[%s658 + $0x14] sm:$0xf]
      %v665 = vld [vmem:[%s658 + $0x18] sm:$0xf]
      %v666 = vld [vmem:[%s658 + $0x1c] sm:$0xf]
      %v667 = vld [vmem:[%s658 + $0x20] sm:$0xf]
      %v668 = vld [vmem:[%s658 + $0x24] sm:$0xf]
      %v669 = vld [vmem:[%s658 + $0x28] sm:$0xf]
      %v670 = vld [vmem:[%s658 + $0x2c] sm:$0xf]
      %v671 = vld [vmem:[%s658 + $0x30] sm:$0xf]
      %v672 = vld [vmem:[%s658 + $0x34] sm:$0xf]
      %v673 = vld [vmem:[%s658 + $0x38] sm:$0xf]
      %v674 = vld [vmem:[%s658 + $0x3c] sm:$0xf]
      %v678 = vunpack.c.l.b16 %v639
      %v679 = vunpack.c.l.b16 %v640
      %v680 = vunpack.c.l.b16 %v657
      %v681 = vpack.c.b16 %v679, %v678
      %v682 = vpack.c.b16 %v680, %v680
      %v684 = vshrl.u32 %v681, 16
      %v686 = vshll.u32 %v681, 16
      %v688 = vrot.slane %v686, 1
      %v689 = vor.u32 %v684, %v688
      %v691 = vshll.u32 %v682, 16
      %v693 = vrot.slane %v691, 1
      %v694 = vsel %vm281, %v689, %v693
      %v712 = vunpack.c.l.b16 %v659
      %v713 = vunpack.c.l.b16 %v660
      %v714 = vunpack.c.l.b16 %v661
      %v715 = vunpack.c.l.b16 %v662
      %v716 = vunpack.c.l.b16 %v663
      %v717 = vunpack.c.l.b16 %v664
      %v718 = vunpack.c.l.b16 %v665
      %v719 = vunpack.c.l.b16 %v666
      %v720 = vunpack.c.l.b16 %v667
      %v721 = vunpack.c.l.b16 %v668
      %v722 = vunpack.c.l.b16 %v669
      %v723 = vunpack.c.l.b16 %v670
      %v724 = vunpack.c.l.b16 %v671
      %v725 = vunpack.c.l.b16 %v672
      %v726 = vunpack.c.l.b16 %v673
      %v727 = vunpack.c.l.b16 %v674
      %v728 = vpack.c.b16 %v713, %v712
      %v729 = vpack.c.b16 %v715, %v714
      %v730 = vpack.c.b16 %v717, %v716
      %v731 = vpack.c.b16 %v719, %v718
      %v732 = vpack.c.b16 %v721, %v720
      %v733 = vpack.c.b16 %v723, %v722
      %v734 = vpack.c.b16 %v725, %v724
      %v735 = vpack.c.b16 %v727, %v726
      %744 = vmatprep.subr.bf16.mxu0 0
      %745 = vmatpush1.bf16.msra.mxu0 %v728
      %746 = vmatprep.subr.bf16.mxu0 0
      %747 = vmatpush1.bf16.msra.mxu0 %v729
      %748 = vmatprep.subr.bf16.mxu0 0
      %749 = vmatpush1.bf16.msra.mxu0 %v730
      %750 = vmatprep.subr.bf16.mxu0 0
      %751 = vmatpush1.bf16.msra.mxu0 %v731
      %752 = vmatprep.subr.bf16.mxu0 0
      %753 = vmatpush1.bf16.msra.mxu0 %v732
      %754 = vmatprep.subr.bf16.mxu0 0
      %755 = vmatpush1.bf16.msra.mxu0 %v733
      %756 = vmatprep.subr.bf16.mxu0 0
      %757 = vmatpush1.bf16.msra.mxu0 %v734
      %758 = vmatprep.subr.bf16.mxu0 0
      %759 = vmatpush1.bf16.msra.mxu0 %v735
      %760 = vmatprep.subr.bf16.mxu0 0
      %761 = vmatpush1.bf16.msra.mxu0 0
      %762 = vmatprep.subr.bf16.mxu0 0
      %763 = vmatpush1.bf16.msra.mxu0 0
      %764 = vmatprep.subr.bf16.mxu0 0
      %765 = vmatpush1.bf16.msra.mxu0 0
      %766 = vmatprep.subr.bf16.mxu0 0
      %767 = vmatpush1.bf16.msra.mxu0 0
      %768 = vmatprep.subr.bf16.mxu0 0
      %769 = vmatpush1.bf16.msra.mxu0 0
      %770 = vmatprep.subr.bf16.mxu0 0
      %771 = vmatpush1.bf16.msra.mxu0 0
      %772 = vmatprep.subr.bf16.mxu0 0
      %773 = vmatpush1.bf16.msra.mxu0 0
      %774 = vmatprep.subr.bf16.mxu0 0
      %775 = vmatpush1.bf16.msra.mxu0 0
      %776 = vmatprep.mubr.bf16.mxu0 0
      %777 = vmatmul.mubr.bf16.gmra.mrb[0].mxu0 %v694
      %v778 = vpop.f32.mrb[0].mxu0
      %v779 = vadd.f32 0.0, %v778
      %v780 = vpop.f32.mrb[0].mxu0
      %v781 = vpop.f32.mrb[0].mxu0
      %v782 = vadd.f32 0.0, %v781
      %v783 = vpop.f32.mrb[0].mxu0
      %784 = vdwg.mxu0
      %v802 = vunpack.c.l.b16 %v641
      %v803 = vunpack.c.l.b16 %v642
      %v804 = vunpack.c.l.b16 %v643
      %v805 = vunpack.c.l.b16 %v644
      %v806 = vunpack.c.l.b16 %v645
      %v807 = vunpack.c.l.b16 %v646
      %v808 = vunpack.c.l.b16 %v647
      %v809 = vunpack.c.l.b16 %v648
      %v810 = vunpack.c.l.b16 %v649
      %v811 = vunpack.c.l.b16 %v650
      %v812 = vunpack.c.l.b16 %v651
      %v813 = vunpack.c.l.b16 %v652
      %v814 = vunpack.c.l.b16 %v653
      %v815 = vunpack.c.l.b16 %v654
      %v816 = vunpack.c.l.b16 %v655
      %v817 = vunpack.c.l.b16 %v656
      %v818 = vpack.c.b16 %v803, %v802
      %v819 = vpack.c.b16 %v805, %v804
      %v820 = vpack.c.b16 %v807, %v806
      %v821 = vpack.c.b16 %v809, %v808
      %v822 = vpack.c.b16 %v811, %v810
      %v823 = vpack.c.b16 %v813, %v812
      %v824 = vpack.c.b16 %v815, %v814
      %v825 = vpack.c.b16 %v817, %v816
      %834 = vmatprep.subr.bf16.mxu0 0
      %835 = vmatpush1.bf16.msra.mxu0 %v818
      %836 = vmatprep.subr.bf16.mxu0 0
      %837 = vmatpush1.bf16.msra.mxu0 %v819
      %838 = vmatprep.subr.bf16.mxu0 0
      %839 = vmatpush1.bf16.msra.mxu0 %v820
      %840 = vmatprep.subr.bf16.mxu0 0
      %841 = vmatpush1.bf16.msra.mxu0 %v821
      %842 = vmatprep.subr.bf16.mxu0 0
      %843 = vmatpush1.bf16.msra.mxu0 %v822
      %844 = vmatprep.subr.bf16.mxu0 0
      %845 = vmatpush1.bf16.msra.mxu0 %v823
      %846 = vmatprep.subr.bf16.mxu0 0
      %847 = vmatpush1.bf16.msra.mxu0 %v824
      %848 = vmatprep.subr.bf16.mxu0 0
      %849 = vmatpush1.bf16.msra.mxu0 %v825
      %850 = vmatprep.subr.bf16.mxu0 0
      %851 = vmatpush1.bf16.msra.mxu0 0
      %852 = vmatprep.subr.bf16.mxu0 0
      %853 = vmatpush1.bf16.msra.mxu0 0
      %854 = vmatprep.subr.bf16.mxu0 0
      %855 = vmatpush1.bf16.msra.mxu0 0
      %856 = vmatprep.subr.bf16.mxu0 0
      %857 = vmatpush1.bf16.msra.mxu0 0
      %858 = vmatprep.subr.bf16.mxu0 0
      %859 = vmatpush1.bf16.msra.mxu0 0
      %860 = vmatprep.subr.bf16.mxu0 0
      %861 = vmatpush1.bf16.msra.mxu0 0
      %862 = vmatprep.subr.bf16.mxu0 0
      %863 = vmatpush1.bf16.msra.mxu0 0
      %864 = vmatprep.subr.bf16.mxu0 0
      %865 = vmatpush1.bf16.msra.mxu0 0
      %866 = vmatprep.mubr.bf16.mxu0 0
      %867 = vmatmul.mubr.bf16.gmra.mrb[0].mxu0 %v681
      %v868 = vpop.f32.mrb[0].mxu0
      %v869 = vadd.f32 %v779, %v868
      %v870 = vpop.f32.mrb[0].mxu0
      %v871 = vpop.f32.mrb[0].mxu0
      %v872 = vadd.f32 %v782, %v871
      %v873 = vpop.f32.mrb[0].mxu0
      %874 = vdwg.mxu0
      %v875 = vld [vmem:[#allocation2] sm:$0xe]
      %s876 = scalar_lea.vmem %s3, 128
      %v877 = vld [vmem:[%s876] sm:$0xf]
      %v878 = vld [vmem:[%s876 + $0x4] sm:$0xf]
      %v879 = vld [vmem:[%s876 + $0x8] sm:$0xf]
      %v880 = vld [vmem:[%s876 + $0xc] sm:$0xf]
      %v881 = vld [vmem:[%s876 + $0x10] sm:$0xf]
      %v882 = vld [vmem:[%s876 + $0x14] sm:$0xf]
      %v883 = vld [vmem:[%s876 + $0x18] sm:$0xf]
      %v884 = vld [vmem:[%s876 + $0x1c] sm:$0xf]
      %v885 = vld [vmem:[%s876 + $0x20] sm:$0xf]
      %v886 = vld [vmem:[%s876 + $0x24] sm:$0xf]
      %v887 = vld [vmem:[%s876 + $0x28] sm:$0xf]
      %v888 = vld [vmem:[%s876 + $0x2c] sm:$0xf]
      %v889 = vld [vmem:[%s876 + $0x30] sm:$0xf]
      %v890 = vld [vmem:[%s876 + $0x34] sm:$0xf]
      %v891 = vld [vmem:[%s876 + $0x38] sm:$0xf]
      %v892 = vld [vmem:[%s876 + $0x3c] sm:$0xf]
      %v894 = vunpack.c.l.b16 %v875
      %v895 = vpack.c.b16 %v679, %v894
      %v896 = vrot.slane %v895, 1
      %v897 = vrot.slane %v682, 1
      %v898 = vsel %vm495, %v896, %v897
      %v916 = vunpack.c.l.b16 %v877
      %v917 = vunpack.c.l.b16 %v878
      %v918 = vunpack.c.l.b16 %v879
      %v919 = vunpack.c.l.b16 %v880
      %v920 = vunpack.c.l.b16 %v881
      %v921 = vunpack.c.l.b16 %v882
      %v922 = vunpack.c.l.b16 %v883
      %v923 = vunpack.c.l.b16 %v884
      %v924 = vunpack.c.l.b16 %v885
      %v925 = vunpack.c.l.b16 %v886
      %v926 = vunpack.c.l.b16 %v887
      %v927 = vunpack.c.l.b16 %v888
      %v928 = vunpack.c.l.b16 %v889
      %v929 = vunpack.c.l.b16 %v890
      %v930 = vunpack.c.l.b16 %v891
      %v931 = vunpack.c.l.b16 %v892
      %v932 = vpack.c.b16 %v917, %v916
      %v933 = vpack.c.b16 %v919, %v918
      %v934 = vpack.c.b16 %v921, %v920
      %v935 = vpack.c.b16 %v923, %v922
      %v936 = vpack.c.b16 %v925, %v924
      %v937 = vpack.c.b16 %v927, %v926
      %v938 = vpack.c.b16 %v929, %v928
      %v939 = vpack.c.b16 %v931, %v930
      %948 = vmatprep.subr.bf16.mxu0 0
      %949 = vmatpush1.bf16.msra.mxu0 %v932
      %950 = vmatprep.subr.bf16.mxu0 0
      %951 = vmatpush1.bf16.msra.mxu0 %v933
      %952 = vmatprep.subr.bf16.mxu0 0
      %953 = vmatpush1.bf16.msra.mxu0 %v934
      %954 = vmatprep.subr.bf16.mxu0 0
      %955 = vmatpush1.bf16.msra.mxu0 %v935
      %956 = vmatprep.subr.bf16.mxu0 0
      %957 = vmatpush1.bf16.msra.mxu0 %v936
      %958 = vmatprep.subr.bf16.mxu0 0
      %959 = vmatpush1.bf16.msra.mxu0 %v937
      %960 = vmatprep.subr.bf16.mxu0 0
      %961 = vmatpush1.bf16.msra.mxu0 %v938
      %962 = vmatprep.subr.bf16.mxu0 0
      %963 = vmatpush1.bf16.msra.mxu0 %v939
      %964 = vmatprep.subr.bf16.mxu0 0
      %965 = vmatpush1.bf16.msra.mxu0 0
      %966 = vmatprep.subr.bf16.mxu0 0
      %967 = vmatpush1.bf16.msra.mxu0 0
      %968 = vmatprep.subr.bf16.mxu0 0
      %969 = vmatpush1.bf16.msra.mxu0 0
      %970 = vmatprep.subr.bf16.mxu0 0
      %971 = vmatpush1.bf16.msra.mxu0 0
      %972 = vmatprep.subr.bf16.mxu0 0
      %973 = vmatpush1.bf16.msra.mxu0 0
      %974 = vmatprep.subr.bf16.mxu0 0
      %975 = vmatpush1.bf16.msra.mxu0 0
      %976 = vmatprep.subr.bf16.mxu0 0
      %977 = vmatpush1.bf16.msra.mxu0 0
      %978 = vmatprep.subr.bf16.mxu0 0
      %979 = vmatpush1.bf16.msra.mxu0 0
      %980 = vmatprep.mubr.bf16.mxu0 0
      %981 = vmatmul.mubr.bf16.gmra.mrb[0].mxu0 %v898
      %v982 = vpop.f32.mrb[0].mxu0
      %v983 = vadd.f32 0.0, %v982
      %v984 = vpop.f32.mrb[0].mxu0
      %v985 = vpop.f32.mrb[0].mxu0
      %v986 = vadd.f32 0.0, %v985
      %v987 = vpop.f32.mrb[0].mxu0
      %988 = vdwg.mxu0
      %v989 = vadd.f32 %v869, %v983
      %v990 = vadd.f32 %v872, %v986
      %v991 = vld [vmem:[%s219] sm:$0xf]
      %v992 = vld [vmem:[%s219 + $0x4] sm:$0xf]
      %v993 = vld [vmem:[%s219 + $0x8] sm:$0x1]
      %v994 = vunpack.c.l.bf16 %v991
      %v995 = vunpack.c.l.bf16 %v992
      %v996 = vunpack.c.l.bf16 %v993
      %v997 = vld [vmem:[%s4] sm:$0x1]
      %v999 = vlaneseq
      %v1000 = vshrl.u32 %v999, 7
      %v1001 = vsub.s32 0, %v1000
      %v1002 = vrot.slane %v997, %v1001
      %v1004 = vadd.f32 %v989, %v1002
      %v1005 = vadd.f32 %v990, %v1002
      %vm1009 = vcmask 1046528
      %v1010 = vrot.slane %v994, 1
      %v1011 = vrot.slane %v995, 1
      %v1012 = vsel %vm1009, %v1010, %v1011
      %v1013 = vrot.slane %v996, 1
      %v1014 = vsel %vm1009, %v1011, %v1013
      %v1017 = vadd.f32 %v1004, %v1012
      %v1018 = vadd.f32 %v1005, %v1014
      %v1019 = vmax.f32 %v1017, 0.0
      %v1020 = vmax.f32 %v1018, 0.0
      %1021 = vst [vmem:[%s224] sm:$0xff] %v1019
      %1022 = vst [vmem:[%s224 + $0x8] sm:$0xff] %v1020
      %p1023 = scmp.lt.s32.totalorder %s16, 1
      %s1024 = scalar_select %p1023, %s16, 1
      %s1025 = smul.addr %s1024, 2
      %s1026 = smul.addr %s1025, 8
      %s1027 = scalar_lea.vmem %s5, %s1026
      // Predicated region
      $region41: #{basic_block_forward.1} parent=39 // pred_check
        %p1028 = pneg %p144
      $region42: #{basic_block_forward.1} parent=39 // pred_check_branch
        %1030 = sbr.rel (%p1028) target = $region44
      $region43: #{basic_block_forward.1} parent=39 // pred_region
        _
      $region44: #{basic_block_forward.1} parent=39 // pred_fallthru
        _
    $region40: #{basic_block_forward.1} parent=5 // pred_fallthru
      _
    %p1031 = scmp.le.s32.totalorder 2, %s11
    // Predicated region
    $region45: #{basic_block_forward.1} parent=5 // pred_check
      %p1032 = pneg %p1031
    $region46: #{basic_block_forward.1} parent=5 // pred_check_branch
      %1034 = sbr.rel (%p1032) target = $region48
    $region47: #{basic_block_forward.1} parent=5 // pred_region
      %s1035 = ssub.s32 %s11, 2
      // Predicated region
      $region49: #{basic_block_forward.1} parent=47 // pred_check
        %p1036 = pneg %p150
      $region50: #{basic_block_forward.1} parent=47 // pred_check_branch
        %1038 = sbr.rel (%p1036) target = $region52
      $region51: #{basic_block_forward.1} parent=47 // pred_region
        %p1039 = scmp.lt.s32.totalorder %s17, 1
        %s1040 = scalar_select %p1039, %s17, 1
        %s1041 = smul.addr %s1040, 2
        %s1042 = smul.addr %s1041, 8
        %s1043 = scalar_lea.vmem %s5, %s1042
      $region52: #{basic_block_forward.1} parent=47 // pred_fallthru
        _
    $region48: #{basic_block_forward.1} parent=5 // pred_fallthru
      _
  $region6: #{basic_block_forward.1} parent=0 // loop_footer
    %s15 = sadd.s32 1, %s11
  $region7: #{basic_block_forward.1} parent=0 // loop_footer_branch
    %10 = sbr.rel target = $region3
  $region8: #{basic_block_forward.1} parent=0 // loop_exit
    _

</llo_original>
